<compile_context>
chip_gen: v5e
topology: v5e:2x2
jax: 0.10.0
libtpu: 0.0.40
codegen_flags: <defaults>
</compile_context>

<pallas_src>
import functools

import jax
import jax.numpy as jnp
from jax.experimental import pallas as pl
from jax.experimental.pallas import tpu as pltpu

_LANE = 128  # padded gate / hidden / feature lane width


# --------------------------------------------------------------------------
# Kernels
# --------------------------------------------------------------------------
def _embed_kernel(x_ref, we_ref, be_ref, feat_ref):
    """feat = tanh(x @ We + be) for all T*B rows at once (lane-dense, bf16 out).

    Lane E of the padded bias is a large constant so tanh() pins that lane to 1.0;
    that constant-1 lane multiplies the bias row of the augmented W_ih later, i.e.
    the GRU input-side gate biases are folded into the MXU for free.
    """
    acc = jnp.dot(x_ref[...].astype(jnp.bfloat16), we_ref[...],
                  preferred_element_type=jnp.float32)
    feat_ref[...] = jnp.tanh(acc + be_ref[...]).astype(jnp.bfloat16)


def _gru_seq_kernel(feat_ref, wih_ref, whh_ref, bhn_ref, h0_ref, hx_ref, h_sc):
    """One GRU step per grid iteration; h carried in VMEM scratch across steps."""
    HP = whh_ref.shape[0]  # 128 (padded hidden width), gates at lane blocks of HP

    @pl.when(pl.program_id(0) == 0)
    def _():
        h_sc[...] = h0_ref[...]

    h = h_sc[...]                                   # (B, HP) f32
    feat = feat_ref[0]                              # (B, EP) bf16 (incl. ones lane)

    # gi already contains (b_ir+b_hr | b_iz+b_hz | b_in) via the ones lane.
    gi = jnp.dot(feat, wih_ref[...], preferred_element_type=jnp.float32)   # (B, 3*HP)
    # Recurrent matmul kept in f32 so the carried state does not drift.
    gh = jnp.dot(h, whh_ref[...], preferred_element_type=jnp.float32)      # (B, 3*HP)

    i_r, i_z, i_n = gi[:, 0:HP], gi[:, HP:2 * HP], gi[:, 2 * HP:3 * HP]
    h_r, h_z, h_n = gh[:, 0:HP], gh[:, HP:2 * HP], gh[:, 2 * HP:3 * HP]

    r = jax.nn.sigmoid(i_r + h_r)
    z = jax.nn.sigmoid(i_z + h_z)
    n = jnp.tanh(i_n + r * (h_n + bhn_ref[...]))
    hx = (1.0 - z) * n + z * h                      # padded lanes stay exactly 0

    h_sc[...] = hx
    hx_ref[0] = hx


def _logits_kernel(hx_ref, wo_ref, bo_ref, out_ref):
    """logits = hx @ Wo + bo for all T*B rows at once (lane-dense 128-wide slab)."""
    out_ref[...] = jnp.dot(hx_ref[...].astype(jnp.bfloat16), wo_ref[...],
                           preferred_element_type=jnp.float32) + bo_ref[...]


# --------------------------------------------------------------------------
# One-time parameter packing (outside the hot jitted path)
# --------------------------------------------------------------------------
def prepare_kernel_params(params):
    """Pad/pack weights once: 128-lane gate blocks, bias folding, bf16 casts."""
    D_in, E = params["we"].shape
    H = params["w_hh"].shape[0]
    O = params["wo"].shape[1]
    HP = _LANE
    EP = _LANE
    assert E + 1 <= EP and H <= HP and O <= HP and 3 * H == params["w_ih"].shape[1]

    # --- embedding: pad We to (D_in, EP); lane E of the bias forces feat[:,E]=1.0 ---
    we_pad = jnp.zeros((D_in, EP), jnp.float32).at[:, :E].set(params["we"])
    be_pad = (jnp.zeros((EP,), jnp.float32)
              .at[:E].set(params["be"])
              .at[E].set(30.0))                       # tanh(30) == 1.0 in f32/bf16

    # --- GRU: each gate (r|z|n) gets its own 128-lane block ---
    b_ih, b_hh = params["b_ih"], params["b_hh"]
    b_g = jnp.concatenate([b_ih[:2 * H] + b_hh[:2 * H], b_ih[2 * H:]])  # b_hn separate

    def pad_gates(w):  # (rows, 3H) -> (rows, 3*HP) with gates at 128-lane boundaries
        out = jnp.zeros((w.shape[0], 3 * HP), jnp.float32)
        for g in range(3):
            out = out.at[:, g * HP:g * HP + H].set(w[:, g * H:(g + 1) * H])
        return out

    w_ih_aug = jnp.zeros((EP, 3 * HP), jnp.float32)
    w_ih_aug = w_ih_aug.at[:E].set(pad_gates(params["w_ih"]))
    w_ih_aug = w_ih_aug.at[E].set(pad_gates(b_g[None, :])[0])   # bias row * ones lane
    w_hh_pad = jnp.zeros((HP, 3 * HP), jnp.float32).at[:H].set(pad_gates(params["w_hh"]))
    b_hn_pad = jnp.zeros((HP,), jnp.float32).at[:H].set(b_hh[2 * H:])

    # --- logits: pad Wo to a (HP, HP) lane-dense block ---
    wo_pad = jnp.zeros((HP, HP), jnp.float32).at[:H, :O].set(params["wo"])
    bo_pad = jnp.zeros((HP,), jnp.float32).at[:O].set(params["bo"])

    return {
        "we": we_pad.astype(jnp.bfloat16),     # (D_in, EP) bf16
        "be": be_pad[None, :],                 # (1, EP)   f32
        "w_ih": w_ih_aug.astype(jnp.bfloat16), # (EP, 3HP) bf16 (biases folded in)
        "w_hh": w_hh_pad,                      # (HP, 3HP) f32  (recurrent path)
        "b_hn": b_hn_pad[None, :],             # (1, HP)   f32
        "wo": wo_pad.astype(jnp.bfloat16),     # (HP, HP)  bf16
        "bo": bo_pad[None, :],                 # (1, HP)   f32
    }


# --------------------------------------------------------------------------
# Forward passes
# --------------------------------------------------------------------------
@functools.partial(jax.jit, static_argnames=("H", "O"))
def my_recurrent_network_forward_seq(xs, h0, kparams, *, H, O):
    """Run the module over a whole sequence.

    xs: (T, B, D_in) f32, h0: (B, H) f32.
    Returns logits_seq (T, B, O) and hx_seq (T, B, H) (all hidden states;
    hx_seq[-1] is the final hidden state).
    """
    T, B, D_in = xs.shape
    EP = kparams["we"].shape[1]
    HP = kparams["w_hh"].shape[0]
    vmem = pl.BlockSpec(memory_space=pltpu.MemorySpace.VMEM)

    # ---- stage 1: embedding for all T*B rows (hoisted out of the recurrence) ----
    feat = pl.pallas_call(
        _embed_kernel,
        out_shape=jax.ShapeDtypeStruct((T * B, EP), jnp.bfloat16),
        in_specs=[vmem, vmem, vmem],
        out_specs=vmem,
    )(xs.reshape(T * B, D_in), kparams["we"], kparams["be"])
    feat = feat.reshape(T, B, EP)

    # ---- stage 2: GRU recurrence fused over T in one pallas_call ----
    h0_pad = jnp.zeros((B, HP), jnp.float32).at[:, :H].set(h0)
    hx_seq_pad = pl.pallas_call(
        _gru_seq_kernel,
        out_shape=jax.ShapeDtypeStruct((T, B, HP), jnp.float32),
        grid_spec=pltpu.PrefetchScalarGridSpec(
            num_scalar_prefetch=0,
            grid=(T,),
            in_specs=[
                pl.BlockSpec((1, B, EP), lambda t: (t, 0, 0)),   # per-step features
                pl.BlockSpec((EP, 3 * HP), lambda t: (0, 0)),    # W_ih+biases, resident
                pl.BlockSpec((HP, 3 * HP), lambda t: (0, 0)),    # W_hh, resident
                pl.BlockSpec((1, HP), lambda t: (0, 0)),         # b_hn, resident
                pl.BlockSpec((B, HP), lambda t: (0, 0)),         # h0, resident
            ],
            out_specs=pl.BlockSpec((1, B, HP), lambda t: (t, 0, 0)),
            scratch_shapes=[pltpu.VMEM((B, HP), jnp.float32)],   # carried hidden state
        ),
        compiler_params=pltpu.CompilerParams(dimension_semantics=("arbitrary",)),
    )(feat, kparams["w_ih"], kparams["w_hh"], kparams["b_hn"], h0_pad)

    # ---- stage 3: logits for all T*B rows (hoisted out of the recurrence) ----
    logits_pad = pl.pallas_call(
        _logits_kernel,
        out_shape=jax.ShapeDtypeStruct((T * B, HP), jnp.float32),
        in_specs=[vmem, vmem, vmem],
        out_specs=vmem,
    )(hx_seq_pad.reshape(T * B, HP), kparams["wo"], kparams["bo"])

    logits_seq = logits_pad.reshape(T, B, HP)[:, :, :O]
    hx_seq = hx_seq_pad[:, :, :H]
    return logits_seq, hx_seq


def my_recurrent_network_forward(x, h, kparams, *, H, O):
    """Single step, matching MyRecurrentNetwork.forward: (x, h) -> (logits, hx)."""
    logits_seq, hx_seq = my_recurrent_network_forward_seq(x[None], h, kparams, H=H, O=O)
    return logits_seq[0], hx_seq[0]


# --------------------------------------------------------------------------
# Plain-JAX f32 reference (mirrors the PyTorch module)
# --------------------------------------------------------------------------
def _reference_forward(x, h, params):
    H = params["w_hh"].shape[0]
    feat = jnp.tanh(x @ params["we"] + params["be"])
    gi = feat @ params["w_ih"] + params["b_ih"]
    gh = h @ params["w_hh"] + params["b_hh"]
    i_r, i_z, i_n = gi[:, :H], gi[:, H:2 * H], gi[:, 2 * H:]
    h_r, h_z, h_n = gh[:, :H], gh[:, H:2 * H], gh[:, 2 * H:]
    r = jax.nn.sigmoid(i_r + h_r)
    z = jax.nn.sigmoid(i_z + h_z)
    n = jnp.tanh(i_n + r * h_n)
    hx = (1.0 - z) * n + z * h
    logits = hx @ params["wo"] + params["bo"]
    return logits, hx


def _reference_rollout(xs, h0, params):
    def step(h, x):
        logits, hx = _reference_forward(x, h, params)
        return hx, (logits, hx)
    _, (logits_seq, hx_seq) = jax.lax.scan(step, h0, xs)
    return logits_seq, hx_seq


if __name__ == "__main__":
    # Small shapes: seq=8, batch=8, num_inputs=16, embed_size=32, rnn_hidden=32, outputs=8
    T, B, D_IN, E, H, O = 8, 8, 16, 32, 32, 8

    key = jax.random.PRNGKey(0)
    keys = jax.random.split(key, 10)
    scale = 0.1
    params = {
        "we":   scale * jax.random.normal(keys[0], (D_IN, E), jnp.float32),
        "be":   scale * jax.random.normal(keys[1], (E,), jnp.float32),
        "w_ih": scale * jax.random.normal(keys[2], (E, 3 * H), jnp.float32),
        "b_ih": scale * jax.random.normal(keys[3], (3 * H,), jnp.float32),
        "w_hh": scale * jax.random.normal(keys[4], (H, 3 * H), jnp.float32),
        "b_hh": scale * jax.random.normal(keys[5], (3 * H,), jnp.float32),
        "wo":   scale * jax.random.normal(keys[6], (H, O), jnp.float32),
        "bo":   scale * jax.random.normal(keys[7], (O,), jnp.float32),
    }
    xs = jax.random.normal(keys[8], (T, B, D_IN), jnp.float32)
    h0 = jax.random.normal(keys[9], (B, H), jnp.float32)

    # One-time packing (outside the hot jitted step path).
    kparams = jax.block_until_ready(prepare_kernel_params(params))

    # Fused sequence rollout.
    logits_seq, hx_seq = my_recurrent_network_forward_seq(xs, h0, kparams, H=H, O=O)
    jax.block_until_ready((logits_seq, hx_seq))
    assert logits_seq.shape == (T, B, O) and hx_seq.shape == (T, B, H)

    ref_logits_seq, ref_hx_seq = _reference_rollout(xs, h0, params)
    # bf16 feed-forward matmul operands (f32 accumulation / f32 recurrent path).
    assert jnp.allclose(logits_seq, ref_logits_seq, atol=2e-2, rtol=2e-2), "seq logits mismatch"
    assert jnp.allclose(hx_seq, ref_hx_seq, atol=2e-2, rtol=2e-2), "seq hidden mismatch"

    # Single-step entry point (module forward semantics).
    logits1, hx1 = my_recurrent_network_forward(xs[0], h0, kparams, H=H, O=O)
    jax.block_until_ready((logits1, hx1))
    ref_l1, ref_h1 = _reference_forward(xs[0], h0, params)
    assert jnp.allclose(logits1, ref_l1, atol=2e-2, rtol=2e-2), "step logits mismatch"
    assert jnp.allclose(hx1, ref_h1, atol=2e-2, rtol=2e-2), "step hidden mismatch"

    print("KERNEL_OK")
</pallas_src>

<mosaic_0001>
module attributes {stable_mosaic.version = 11 : i64} {
  func.func @_embed_kernel(%arg0: memref<64x16xf32, #tpu.memory_space<vmem>>, %arg1: memref<16x128xbf16, #tpu.memory_space<vmem>>, %arg2: memref<1x128xf32, #tpu.memory_space<vmem>>, %arg3: memref<64x128xbf16, #tpu.memory_space<vmem>>) attributes {dimension_semantics = [], scalar_prefetch = 0 : i64, scratch_operands = 0 : i64, tpu.core_type = #tpu.core_type<tc>} {
    %c0 = arith.constant 0 : index
    %c0_0 = arith.constant 0 : index
    %0 = vector.load %arg0[%c0, %c0_0] : memref<64x16xf32, #tpu.memory_space<vmem>>, vector<64x16xf32>
    %1 = arith.truncf %0 : vector<64x16xf32> to vector<64x16xbf16>
    %c0_1 = arith.constant 0 : index
    %c0_2 = arith.constant 0 : index
    %2 = vector.load %arg1[%c0_1, %c0_2] : memref<16x128xbf16, #tpu.memory_space<vmem>>, vector<16x128xbf16>
    %cst = arith.constant dense<0.000000e+00> : vector<64x128xf32>
    %3 = tpu.matmul %1, %2, %cst {dimension_numbers = #tpu.dot_dimension_numbers<[1], [0], [0], [1], [0, 0, 1, 1], [], []>} : vector<64x16xbf16>, vector<16x128xbf16>, vector<64x128xf32> -> vector<64x128xf32>
    %c0_3 = arith.constant 0 : index
    %c0_4 = arith.constant 0 : index
    %4 = vector.load %arg2[%c0_3, %c0_4] : memref<1x128xf32, #tpu.memory_space<vmem>>, vector<1x128xf32>
    %5 = vector.broadcast %4 : vector<1x128xf32> to vector<64x128xf32>
    %6 = arith.addf %3, %5 : vector<64x128xf32>
    %7 = math.tanh %6 : vector<64x128xf32>
    %8 = arith.truncf %7 : vector<64x128xf32> to vector<64x128xbf16>
    %c0_5 = arith.constant 0 : index
    %c0_6 = arith.constant 0 : index
    %9 = vector.load %arg3[%c0_5, %c0_6] : memref<64x128xbf16, #tpu.memory_space<vmem>>, vector<64x128xbf16>
    tpu.vector_store %arg3[%c0_5, %c0_6], %8 {strides = array<i32>} : memref<64x128xbf16, #tpu.memory_space<vmem>>, vector<64x128xbf16>,
    return
  }
}

module attributes {stable_mosaic.version = 11 : i64} {
  func.func @_logits_kernel(%arg0: memref<64x128xf32, #tpu.memory_space<vmem>>, %arg1: memref<128x128xbf16, #tpu.memory_space<vmem>>, %arg2: memref<1x128xf32, #tpu.memory_space<vmem>>, %arg3: memref<64x128xf32, #tpu.memory_space<vmem>>) attributes {dimension_semantics = [], scalar_prefetch = 0 : i64, scratch_operands = 0 : i64, tpu.core_type = #tpu.core_type<tc>} {
    %c0 = arith.constant 0 : index
    %c0_0 = arith.constant 0 : index
    %0 = vector.load %arg0[%c0, %c0_0] : memref<64x128xf32, #tpu.memory_space<vmem>>, vector<64x128xf32>
    %1 = arith.truncf %0 : vector<64x128xf32> to vector<64x128xbf16>
    %c0_1 = arith.constant 0 : index
    %c0_2 = arith.constant 0 : index
    %2 = vector.load %arg1[%c0_1, %c0_2] : memref<128x128xbf16, #tpu.memory_space<vmem>>, vector<128x128xbf16>
    %cst = arith.constant dense<0.000000e+00> : vector<64x128xf32>
    %3 = tpu.matmul %1, %2, %cst {dimension_numbers = #tpu.dot_dimension_numbers<[1], [0], [0], [1], [0, 0, 1, 1], [], []>} : vector<64x128xbf16>, vector<128x128xbf16>, vector<64x128xf32> -> vector<64x128xf32>
    %c0_3 = arith.constant 0 : index
    %c0_4 = arith.constant 0 : index
    %4 = vector.load %arg2[%c0_3, %c0_4] : memref<1x128xf32, #tpu.memory_space<vmem>>, vector<1x128xf32>
    %5 = vector.broadcast %4 : vector<1x128xf32> to vector<64x128xf32>
    %6 = arith.addf %3, %5 : vector<64x128xf32>
    %c0_5 = arith.constant 0 : index
    %c0_6 = arith.constant 0 : index
    %7 = vector.load %arg3[%c0_5, %c0_6] : memref<64x128xf32, #tpu.memory_space<vmem>>, vector<64x128xf32>
    tpu.vector_store %arg3[%c0_5, %c0_6], %6 {strides = array<i32>} : memref<64x128xf32, #tpu.memory_space<vmem>>, vector<64x128xf32>,
    return
  }
}

module attributes {stable_mosaic.version = 11 : i64} {
  func.func @_gru_seq_kernel(%arg0: i32, %arg1: memref<1x8x128xbf16, #tpu.memory_space<vmem>>, %arg2: memref<128x384xbf16, #tpu.memory_space<vmem>>, %arg3: memref<128x384xf32, #tpu.memory_space<vmem>>, %arg4: memref<1x128xf32, #tpu.memory_space<vmem>>, %arg5: memref<8x128xf32, #tpu.memory_space<vmem>>, %arg6: memref<1x8x128xf32, #tpu.memory_space<vmem>>, %arg7: memref<8x128xf32, #tpu.memory_space<vmem>>) attributes {dimension_semantics = [#tpu.dimension_semantics<arbitrary>], iteration_bounds = array<i64: 8>, scalar_prefetch = 0 : i64, scratch_operands = 1 : i64, tpu.core_type = #tpu.core_type<tc>, window_params = [{transform_indices = @transform_0, window_bounds = array<i64: 1, 8, 128>}, {pipeline_mode = #tpu.pipeline_mode<synchronous>, transform_indices = @transform_1, window_bounds = array<i64: 128, 384>}, {pipeline_mode = #tpu.pipeline_mode<synchronous>, transform_indices = @transform_2, window_bounds = array<i64: 128, 384>}, {pipeline_mode = #tpu.pipeline_mode<synchronous>, transform_indices = @transform_3, window_bounds = array<i64: 1, 128>}, {pipeline_mode = #tpu.pipeline_mode<synchronous>, transform_indices = @transform_4, window_bounds = array<i64: 8, 128>}, {transform_indices = @transform_5, window_bounds = array<i64: 1, 8, 128>}]} {
    %c0_i32 = arith.constant 0 : i32
    %0 = arith.cmpi eq, %arg0, %c0_i32 : i32
    %1 = arith.extui %0 : i1 to i32
    %c0_i32_0 = arith.constant 0 : i32
    %2 = arith.cmpi ne, %1, %c0_i32_0 : i32
    scf.if %2 {
      %c0_20 = arith.constant 0 : index
      %c0_21 = arith.constant 0 : index
      %43 = vector.load %arg5[%c0_20, %c0_21] : memref<8x128xf32, #tpu.memory_space<vmem>>, vector<8x128xf32>
      %c0_22 = arith.constant 0 : index
      %c0_23 = arith.constant 0 : index
      %44 = vector.load %arg7[%c0_22, %c0_23] : memref<8x128xf32, #tpu.memory_space<vmem>>, vector<8x128xf32>
      tpu.vector_store %arg7[%c0_22, %c0_23], %43 {strides = array<i32>} : memref<8x128xf32, #tpu.memory_space<vmem>>, vector<8x128xf32>,
    } else {
    }
    %c0 = arith.constant 0 : index
    %c0_1 = arith.constant 0 : index
    %3 = vector.load %arg7[%c0, %c0_1] : memref<8x128xf32, #tpu.memory_space<vmem>>, vector<8x128xf32>
    %c0_2 = arith.constant 0 : index
    %c0_3 = arith.constant 0 : index
    %c0_4 = arith.constant 0 : index
    %4 = vector.load %arg1[%c0_2, %c0_3, %c0_4] : memref<1x8x128xbf16, #tpu.memory_space<vmem>>, vector<1x8x128xbf16>
    %5 = vector.shape_cast %4 : vector<1x8x128xbf16> to vector<8x128xbf16>
    %c0_5 = arith.constant 0 : index
    %c0_6 = arith.constant 0 : index
    %6 = vector.load %arg2[%c0_5, %c0_6] : memref<128x384xbf16, #tpu.memory_space<vmem>>, vector<128x384xbf16>
    %cst = arith.constant dense<0.000000e+00> : vector<8x384xf32>
    %7 = tpu.matmul %5, %6, %cst {dimension_numbers = #tpu.dot_dimension_numbers<[1], [0], [0], [1], [0, 0, 1, 1], [], []>} : vector<8x128xbf16>, vector<128x384xbf16>, vector<8x384xf32> -> vector<8x384xf32>
    %c0_7 = arith.constant 0 : index
    %c0_8 = arith.constant 0 : index
    %8 = vector.load %arg3[%c0_7, %c0_8] : memref<128x384xf32, #tpu.memory_space<vmem>>, vector<128x384xf32>
    %cst_9 = arith.constant dense<0.000000e+00> : vector<8x384xf32>
    %9 = tpu.matmul %3, %8, %cst_9 {dimension_numbers = #tpu.dot_dimension_numbers<[1], [0], [0], [1], [0, 0, 1, 1], [], []>} : vector<8x128xf32>, vector<128x384xf32>, vector<8x384xf32> -> vector<8x384xf32>
    %10 = vector.extract_strided_slice %7 {offsets = [0, 0], sizes = [8, 128], strides = [1, 1]} : vector<8x384xf32> to vector<8x128xf32>
    %11 = vector.extract_strided_slice %7 {offsets = [0, 128], sizes = [8, 128], strides = [1, 1]} : vector<8x384xf32> to vector<8x128xf32>
    %12 = vector.extract_strided_slice %7 {offsets = [0, 256], sizes = [8, 128], strides = [1, 1]} : vector<8x384xf32> to vector<8x128xf32>
    %13 = vector.extract_strided_slice %9 {offsets = [0, 0], sizes = [8, 128], strides = [1, 1]} : vector<8x384xf32> to vector<8x128xf32>
    %14 = vector.extract_strided_slice %9 {offsets = [0, 128], sizes = [8, 128], strides = [1, 1]} : vector<8x384xf32> to vector<8x128xf32>
    %15 = vector.extract_strided_slice %9 {offsets = [0, 256], sizes = [8, 128], strides = [1, 1]} : vector<8x384xf32> to vector<8x128xf32>
    %16 = arith.addf %10, %13 : vector<8x128xf32>
    %17 = arith.negf %16 : vector<8x128xf32>
    %18 = math.exp %17 : vector<8x128xf32>
    %cst_10 = arith.constant 1.000000e+00 : f32
    %19 = vector.broadcast %cst_10 : f32 to vector<8x128xf32>
    %20 = arith.addf %19, %18 : vector<8x128xf32>
    %21 = arith.divf %19, %20 : vector<8x128xf32>
    %22 = arith.addf %11, %14 : vector<8x128xf32>
    %23 = arith.negf %22 : vector<8x128xf32>
    %24 = math.exp %23 : vector<8x128xf32>
    %cst_11 = arith.constant 1.000000e+00 : f32
    %25 = vector.broadcast %cst_11 : f32 to vector<8x128xf32>
    %26 = arith.addf %25, %24 : vector<8x128xf32>
    %27 = arith.divf %25, %26 : vector<8x128xf32>
    %c0_12 = arith.constant 0 : index
    %c0_13 = arith.constant 0 : index
    %28 = vector.load %arg4[%c0_12, %c0_13] : memref<1x128xf32, #tpu.memory_space<vmem>>, vector<1x128xf32>
    %29 = vector.broadcast %28 : vector<1x128xf32> to vector<8x128xf32>
    %30 = arith.addf %15, %29 : vector<8x128xf32>
    %31 = arith.mulf %21, %30 : vector<8x128xf32>
    %32 = arith.addf %12, %31 : vector<8x128xf32>
    %33 = math.tanh %32 : vector<8x128xf32>
    %cst_14 = arith.constant 1.000000e+00 : f32
    %34 = vector.broadcast %cst_14 : f32 to vector<8x128xf32>
    %35 = arith.subf %34, %27 : vector<8x128xf32>
    %36 = arith.mulf %35, %33 : vector<8x128xf32>
    %37 = arith.mulf %27, %3 : vector<8x128xf32>
    %38 = arith.addf %36, %37 : vector<8x128xf32>
    %c0_15 = arith.constant 0 : index
    %c0_16 = arith.constant 0 : index
    %39 = vector.load %arg7[%c0_15, %c0_16] : memref<8x128xf32, #tpu.memory_space<vmem>>, vector<8x128xf32>
    tpu.vector_store %arg7[%c0_15, %c0_16], %38 {strides = array<i32>} : memref<8x128xf32, #tpu.memory_space<vmem>>, vector<8x128xf32>,
    %c0_17 = arith.constant 0 : index
    %c0_18 = arith.constant 0 : index
    %c0_19 = arith.constant 0 : index
    %40 = vector.load %arg6[%c0_17, %c0_18, %c0_19] : memref<1x8x128xf32, #tpu.memory_space<vmem>>, vector<1x8x128xf32>
    %41 = vector.shape_cast %40 : vector<1x8x128xf32> to vector<8x128xf32>
    %42 = vector.shape_cast %38 : vector<8x128xf32> to vector<1x8x128xf32>
    tpu.vector_store %arg6[%c0_17, %c0_18, %c0_19], %42 {strides = array<i32>} : memref<1x8x128xf32, #tpu.memory_space<vmem>>, vector<1x8x128xf32>,
    return
  }
  func.func @transform_0(%arg0: i32) -> (i32, i32, i32) {
    %c0_i32 = arith.constant 0 : i32
    %c0_i32_0 = arith.constant 0 : i32
    %c0_i32_1 = arith.constant 0 : i32
    return %arg0, %c0_i32, %c0_i32_0 : i32, i32, i32
  }
  func.func @transform_1(%arg0: i32) -> (i32, i32) {
    %c0_i32 = arith.constant 0 : i32
    %c0_i32_0 = arith.constant 0 : i32
    %c0_i32_1 = arith.constant 0 : i32
    return %c0_i32, %c0_i32_0 : i32, i32
  }
  func.func @transform_2(%arg0: i32) -> (i32, i32) {
    %c0_i32 = arith.constant 0 : i32
    %c0_i32_0 = arith.constant 0 : i32
    %c0_i32_1 = arith.constant 0 : i32
    return %c0_i32, %c0_i32_0 : i32, i32
  }
  func.func @transform_3(%arg0: i32) -> (i32, i32) {
    %c0_i32 = arith.constant 0 : i32
    %c0_i32_0 = arith.constant 0 : i32
    %c0_i32_1 = arith.constant 0 : i32
    return %c0_i32, %c0_i32_0 : i32, i32
  }
  func.func @transform_4(%arg0: i32) -> (i32, i32) {
    %c0_i32 = arith.constant 0 : i32
    %c0_i32_0 = arith.constant 0 : i32
    %c0_i32_1 = arith.constant 0 : i32
    return %c0_i32, %c0_i32_0 : i32, i32
  }
  func.func @transform_5(%arg0: i32) -> (i32, i32, i32) {
    %c0_i32 = arith.constant 0 : i32
    %c0_i32_0 = arith.constant 0 : i32
    %c0_i32_1 = arith.constant 0 : i32
    return %arg0, %c0_i32, %c0_i32_0 : i32, i32, i32
  }
}

</mosaic_0001>

<llo_original>
// kernel: my_recurrent_network_forward_seq.5
$region0: #{my_recurrent_network_forward_seq.5}
  #allocation0 [shape = 'u32[]', space=smem, size = 0x4, offset = 0x4, fixed_abs, tag = 'smem constant byte address 0x4 - core index']
  #allocation1 [shape = 'u32[72,128]{1,0:T(1,128)}', space=vmem, size = 0x9000, scoped, tag = 'internal scratch']
  %s0 = inlined_call_operand.vmem [shape: f32[64,128], index: 0, kind: input, shape index: {}]
  %s1 = inlined_call_operand.hbm [shape: bf16[128,128], index: 1, kind: input, shape index: {}]
  %s2 = inlined_call_operand.vmem [shape: f32[1,128], index: 2, kind: input, shape index: {}]
  %s3 = inlined_call_operand.hbm [shape: f32[64,128], index: 3, kind: output, shape index: {}]
  %s4 = sld [smem:[#allocation0]]
  $region26: #{my_recurrent_network_forward_seq.5} parent=0
    _
  %s6 = ssub.s32 1, %s4
  %s7 = scalar_select 0, %s6, %s4
  $region1: #{my_recurrent_network_forward_seq.5} parent=0
    #allocation2 [shape = 'u8[32768]{0}', space=vmem, size = 0x8000, scoped, tag = 'input window, operand 1, single buffered']
    #allocation3 [shape = 's32[1]{0}', space=sflag, size = 0x4, scoped, tag = 'scoped memory for my_recurrent_network_forward_seq.5']
    #allocation4 [shape = 's32[1]{0}', space=sflag, size = 0x4, scoped, tag = 'scoped memory for my_recurrent_network_forward_seq.5']
    #allocation5 [shape = 'u8[32768]{0}', space=vmem, size = 0x8000, scoped, tag = 'output window, operand 0, single buffered']
    %8 = vsyncpa [#allocation3], 0
    %9 = vsyncpa [#allocation4], 0
    // Predicated region
    $region2: #{my_recurrent_network_forward_seq.5} parent=1 // pred_check
      _
    $region3: #{my_recurrent_network_forward_seq.5} parent=1 // pred_check_branch
      %11 = sbr.rel (0) target = $region5
    $region4: #{my_recurrent_network_forward_seq.5} parent=1 // pred_region
      _
    $region5: #{my_recurrent_network_forward_seq.5} parent=1 // pred_fallthru
      _
    // Predicated region
    $region6: #{my_recurrent_network_forward_seq.5} parent=1 // pred_check
      _
    $region7: #{my_recurrent_network_forward_seq.5} parent=1 // pred_check_branch
      %13 = sbr.rel (0) target = $region9
    $region8: #{my_recurrent_network_forward_seq.5} parent=1 // pred_region
      %15 = vsyncadd [#allocation3], 0
      %s16 = sshll.u32 %s1, 4
      %s17 = int_to_ptr.hbm [resolvable:$true] %s16
      %s18 = sshll.u32 [#allocation2], 4
      %s19 = int_to_ptr.vmem [resolvable:$true] %s18
      %24 = dma.hbm_to_vmem [thread:$0]  %s17, 1024, %s19, [#allocation3], 64, 64, 4
    $region9: #{my_recurrent_network_forward_seq.5} parent=1 // pred_fallthru
      _
    // Predicated region
    $region10: #{my_recurrent_network_forward_seq.5} parent=1 // pred_check
      _
    $region11: #{my_recurrent_network_forward_seq.5} parent=1 // pred_check_branch
      %26 = sbr.rel (0) target = $region13
    $region12: #{my_recurrent_network_forward_seq.5} parent=1 // pred_region
      _
    $region13: #{my_recurrent_network_forward_seq.5} parent=1 // pred_fallthru
      _
    // Predicated region
    $region14: #{my_recurrent_network_forward_seq.5} parent=1 // pred_check
      _
    $region15: #{my_recurrent_network_forward_seq.5} parent=1 // pred_check_branch
      %28 = sbr.rel (0) target = $region17
    $region16: #{my_recurrent_network_forward_seq.5} parent=1 // pred_region
      %30 = dma.done [#allocation3], 1024
    $region17: #{my_recurrent_network_forward_seq.5} parent=1 // pred_fallthru
      _
    %v31 = vld [vmem:[%s0] sm:$0xff]
    %v32 = vld [vmem:[%s0 + $0x8] sm:$0xff]
    %v33 = vld [vmem:[%s0 + $0x10] sm:$0xff]
    %v34 = vld [vmem:[%s0 + $0x18] sm:$0xff]
    %v35 = vld [vmem:[%s0 + $0x20] sm:$0xff]
    %v36 = vld [vmem:[%s0 + $0x28] sm:$0xff]
    %v37 = vld [vmem:[%s0 + $0x30] sm:$0xff]
    %v38 = vld [vmem:[%s0 + $0x38] sm:$0xff]
    %v39 = vpack.c.bf16 %v32, %v31
    %v40 = vpack.c.bf16 %v34, %v33
    %v41 = vpack.c.bf16 %v36, %v35
    %v42 = vpack.c.bf16 %v38, %v37
    %v43 = vld [vmem:[#allocation2] sm:$0xf]
    %v44 = vld [vmem:[#allocation2 + $0x4] sm:$0xf]
    %v45 = vld [vmem:[#allocation2 + $0x8] sm:$0xf]
    %v46 = vld [vmem:[#allocation2 + $0xc] sm:$0xf]
    %v47 = vld [vmem:[#allocation2 + $0x10] sm:$0xf]
    %v48 = vld [vmem:[#allocation2 + $0x14] sm:$0xf]
    %v49 = vld [vmem:[#allocation2 + $0x18] sm:$0xf]
    %v50 = vld [vmem:[#allocation2 + $0x1c] sm:$0xf]
    %v51 = vld [vmem:[#allocation2 + $0x20] sm:$0xf]
    %v52 = vld [vmem:[#allocation2 + $0x24] sm:$0xf]
    %v53 = vld [vmem:[#allocation2 + $0x28] sm:$0xf]
    %v54 = vld [vmem:[#allocation2 + $0x2c] sm:$0xf]
    %v55 = vld [vmem:[#allocation2 + $0x30] sm:$0xf]
    %v56 = vld [vmem:[#allocation2 + $0x34] sm:$0xf]
    %v57 = vld [vmem:[#allocation2 + $0x38] sm:$0xf]
    %v58 = vld [vmem:[#allocation2 + $0x3c] sm:$0xf]
    %v59 = vld [vmem:[%s2] sm:$0x1]
    %v61 = vperm.slane %v59, 0
    %v79 = vunpack.c.l.b16 %v43
    %v80 = vunpack.c.l.b16 %v44
    %v81 = vunpack.c.l.b16 %v45
    %v82 = vunpack.c.l.b16 %v46
    %v83 = vunpack.c.l.b16 %v47
    %v84 = vunpack.c.l.b16 %v48
    %v85 = vunpack.c.l.b16 %v49
    %v86 = vunpack.c.l.b16 %v50
    %v87 = vunpack.c.l.b16 %v51
    %v88 = vunpack.c.l.b16 %v52
    %v89 = vunpack.c.l.b16 %v53
    %v90 = vunpack.c.l.b16 %v54
    %v91 = vunpack.c.l.b16 %v55
    %v92 = vunpack.c.l.b16 %v56
    %v93 = vunpack.c.l.b16 %v57
    %v94 = vunpack.c.l.b16 %v58
    %v95 = vpack.c.b16 %v80, %v79
    %v96 = vpack.c.b16 %v82, %v81
    %v97 = vpack.c.b16 %v84, %v83
    %v98 = vpack.c.b16 %v86, %v85
    %v99 = vpack.c.b16 %v88, %v87
    %v100 = vpack.c.b16 %v90, %v89
    %v101 = vpack.c.b16 %v92, %v91
    %v102 = vpack.c.b16 %v94, %v93
    %111 = vmatpush.bf16.msra.mxu0 %v102
    %112 = vmatpush.bf16.msra.mxu0 %v101
    %113 = vmatpush.bf16.msra.mxu0 %v100
    %114 = vmatpush.bf16.msra.mxu0 %v99
    %115 = vmatpush.bf16.msra.mxu0 %v98
    %116 = vmatpush.bf16.msra.mxu0 %v97
    %117 = vmatpush.bf16.msra.mxu0 %v96
    %118 = vmatpush.bf16.msra.mxu0 %v95
    %119 = vmatmul.bf16.gmra.mxu0 %v39
    %v120 = vpop.f32.mrf.mxu0
    %v121 = vadd.f32 %v61, %v120
    %v122 = vpop.f32.mrf.mxu0
    %v123 = vadd.f32 %v61, %v122
    %124 = vmatmul.bf16.gmra.mxu0 %v40
    %v125 = vpop.f32.mrf.mxu0
    %v126 = vadd.f32 %v61, %v125
    %v127 = vpop.f32.mrf.mxu0
    %v128 = vadd.f32 %v61, %v127
    %129 = vmatmul.bf16.gmra.mxu0 %v41
    %v130 = vpop.f32.mrf.mxu0
    %v131 = vadd.f32 %v61, %v130
    %v132 = vpop.f32.mrf.mxu0
    %v133 = vadd.f32 %v61, %v132
    %134 = vmatmul.bf16.gmra.mxu0 %v42
    %v135 = vpop.f32.mrf.mxu0
    %v136 = vadd.f32 %v61, %v135
    %v137 = vpop.f32.mrf.mxu0
    %v138 = vadd.f32 %v61, %v137
    %139 = vdwg.mxu0
    %140 = vst [vmem:[#allocation5] sm:$0xff] %v121
    %141 = vst [vmem:[#allocation5 + $0x8] sm:$0xff] %v123
    %142 = vst [vmem:[#allocation5 + $0x10] sm:$0xff] %v126
    %143 = vst [vmem:[#allocation5 + $0x18] sm:$0xff] %v128
    %144 = vst [vmem:[#allocation5 + $0x20] sm:$0xff] %v131
    %145 = vst [vmem:[#allocation5 + $0x28] sm:$0xff] %v133
    %146 = vst [vmem:[#allocation5 + $0x30] sm:$0xff] %v136
    %147 = vst [vmem:[#allocation5 + $0x38] sm:$0xff] %v138
    // Predicated region
    $region18: #{my_recurrent_network_forward_seq.5} parent=1 // pred_check
      _
    $region19: #{my_recurrent_network_forward_seq.5} parent=1 // pred_check_branch
      %149 = sbr.rel (0) target = $region21
    $region20: #{my_recurrent_network_forward_seq.5} parent=1 // pred_region
      %151 = vsyncadd [#allocation4], 0
      %s152 = sshll.u32 [#allocation5], 4
      %s153 = int_to_ptr.vmem [resolvable:$true] %s152
      %s154 = sshll.u32 %s3, 4
      %s155 = int_to_ptr.hbm [resolvable:$true] %s154
      %160 = dma.vmem_to_hbm [thread:$0]  %s153, 1024, %s155, [#allocation4], 128, 128, 8
    $region21: #{my_recurrent_network_forward_seq.5} parent=1 // pred_fallthru
      _
    // Predicated region
    $region22: #{my_recurrent_network_forward_seq.5} parent=1 // pred_check
      _
    $region23: #{my_recurrent_network_forward_seq.5} parent=1 // pred_check_branch
      %162 = sbr.rel (0) target = $region25
    $region24: #{my_recurrent_network_forward_seq.5} parent=1 // pred_region
      %164 = dma.done [#allocation4], 1024
    $region25: #{my_recurrent_network_forward_seq.5} parent=1 // pred_fallthru
      _
    %165 = vsyncpa [#allocation3], 1
    %166 = vsyncpa [#allocation4], 1

// kernel: my_recurrent_network_forward_seq.3
$region0: #{my_recurrent_network_forward_seq.3}
  #allocation0 [shape = 'u32[]', space=smem, size = 0x4, offset = 0x4, fixed_abs, tag = 'smem constant byte address 0x4 - core index']
  #allocation1 [shape = 'u32[72,128]{1,0:T(1,128)}', space=vmem, size = 0x9000, scoped, tag = 'internal scratch']
  %s0 = inlined_call_operand.hbm [shape: f32[64,16], index: 0, kind: input, shape index: {}]
  %s1 = inlined_call_operand.vmem [shape: bf16[16,128], index: 1, kind: input, shape index: {}]
  %s2 = inlined_call_operand.vmem [shape: f32[1,128], index: 2, kind: input, shape index: {}]
  %s3 = inlined_call_operand.vmem [shape: bf16[64,128], index: 3, kind: output, shape index: {}]
  %s4 = sld [smem:[#allocation0]]
  $region26: #{my_recurrent_network_forward_seq.3} parent=0
    _
  %s6 = ssub.s32 1, %s4
  %s7 = scalar_select 0, %s6, %s4
  $region1: #{my_recurrent_network_forward_seq.3} parent=0
    #allocation2 [shape = 'u8[32768]{0}', space=vmem, size = 0x8000, scoped, tag = 'input window, operand 0, single buffered']
    #allocation3 [shape = 's32[1]{0}', space=sflag, size = 0x4, scoped, tag = 'scoped memory for my_recurrent_network_forward_seq.3']
    %8 = vsyncpa [#allocation3], 0
    // Predicated region
    $region2: #{my_recurrent_network_forward_seq.3} parent=1 // pred_check
      _
    $region3: #{my_recurrent_network_forward_seq.3} parent=1 // pred_check_branch
      %10 = sbr.rel (0) target = $region5
    $region4: #{my_recurrent_network_forward_seq.3} parent=1 // pred_region
      %12 = vsyncadd [#allocation3], 0
      %s13 = sshll.u32 %s0, 4
      %s14 = int_to_ptr.hbm [resolvable:$true] %s13
      %s15 = sshll.u32 [#allocation2], 4
      %s16 = int_to_ptr.vmem [resolvable:$true] %s15
      %21 = dma.hbm_to_vmem [thread:$0]  %s14, 1024, %s16, [#allocation3], 128, 128, 8
    $region5: #{my_recurrent_network_forward_seq.3} parent=1 // pred_fallthru
      _
    // Predicated region
    $region6: #{my_recurrent_network_forward_seq.3} parent=1 // pred_check
      _
    $region7: #{my_recurrent_network_forward_seq.3} parent=1 // pred_check_branch
      %23 = sbr.rel (0) target = $region9
    $region8: #{my_recurrent_network_forward_seq.3} parent=1 // pred_region
      _
    $region9: #{my_recurrent_network_forward_seq.3} parent=1 // pred_fallthru
      _
    // Predicated region
    $region10: #{my_recurrent_network_forward_seq.3} parent=1 // pred_check
      _
    $region11: #{my_recurrent_network_forward_seq.3} parent=1 // pred_check_branch
      %25 = sbr.rel (0) target = $region13
    $region12: #{my_recurrent_network_forward_seq.3} parent=1 // pred_region
      _
    $region13: #{my_recurrent_network_forward_seq.3} parent=1 // pred_fallthru
      _
    // Predicated region
    $region14: #{my_recurrent_network_forward_seq.3} parent=1 // pred_check
      _
    $region15: #{my_recurrent_network_forward_seq.3} parent=1 // pred_check_branch
      %27 = sbr.rel (0) target = $region17
    $region16: #{my_recurrent_network_forward_seq.3} parent=1 // pred_region
      %29 = dma.done [#allocation3], 1024
    $region17: #{my_recurrent_network_forward_seq.3} parent=1 // pred_fallthru
      _
    %v31 = vld [vmem:[#allocation2] sm:$0xff]
    %v32 = vld [vmem:[#allocation2 + $0x8] sm:$0xff]
    %v33 = vld [vmem:[#allocation2 + $0x10] sm:$0xff]
    %v34 = vld [vmem:[#allocation2 + $0x18] sm:$0xff]
    %v35 = vld [vmem:[#allocation2 + $0x20] sm:$0xff]
    %v36 = vld [vmem:[#allocation2 + $0x28] sm:$0xff]
    %v37 = vld [vmem:[#allocation2 + $0x30] sm:$0xff]
    %v38 = vld [vmem:[#allocation2 + $0x38] sm:$0xff]
    %v39 = vpack.c.bf16 %v32, %v31
    %v40 = vpack.c.bf16 %v34, %v33
    %v41 = vpack.c.bf16 %v36, %v35
    %v42 = vpack.c.bf16 %v38, %v37
    %v43 = vld [vmem:[%s1] sm:$0xf]
    %v44 = vld [vmem:[%s1 + $0x4] sm:$0xf]
    %v45 = vld [vmem:[%s2] sm:$0x1]
    %v47 = vperm.slane %v45, 0
    %v51 = vunpack.c.l.b16 %v43
    %v52 = vunpack.c.l.b16 %v44
    %v53 = vpack.c.b16 %v52, %v51
    %vm55 = vcmask 130048
    %v57 = vsel %vm55, %v39, 0
    %v60 = vsel %vm55, %v40, 0
    %v63 = vsel %vm55, %v41, 0
    %v66 = vsel %vm55, %v42, 0
    %68 = vmatpush.bf16.msra.mxu0 0
    %69 = vmatpush.bf16.msra.mxu0 0
    %70 = vmatpush.bf16.msra.mxu0 0
    %71 = vmatpush.bf16.msra.mxu0 0
    %72 = vmatpush.bf16.msra.mxu0 0
    %73 = vmatpush.bf16.msra.mxu0 0
    %74 = vmatpush.bf16.msra.mxu0 0
    %75 = vmatpush.bf16.msra.mxu0 %v53
    %76 = vmatmul.bf16.gmra.mxu0 %v57
    %v77 = vpop.f32.mrf.mxu0
    %v78 = vadd.f32 %v47, %v77
    %v79 = vpop.f32.mrf.mxu0
    %v80 = vadd.f32 %v47, %v79
    %81 = vmatmul.bf16.gmra.mxu0 %v60
    %v82 = vpop.f32.mrf.mxu0
    %v83 = vadd.f32 %v47, %v82
    %v84 = vpop.f32.mrf.mxu0
    %v85 = vadd.f32 %v47, %v84
    %86 = vmatmul.bf16.gmra.mxu0 %v63
    %v87 = vpop.f32.mrf.mxu0
    %v88 = vadd.f32 %v47, %v87
    %v89 = vpop.f32.mrf.mxu0
    %v90 = vadd.f32 %v47, %v89
    %91 = vmatmul.bf16.gmra.mxu0 %v66
    %v92 = vpop.f32.mrf.mxu0
    %v93 = vadd.f32 %v47, %v92
    %v94 = vpop.f32.mrf.mxu0
    %v95 = vadd.f32 %v47, %v94
    %96 = vdwg.mxu0
    %v97 = vtanh.pop %v78
    %v98 = vtanh.pop %v80
    %v99 = vtanh.pop %v83
    %v100 = vtanh.pop %v85
    %v101 = vtanh.pop %v88
    %v102 = vtanh.pop %v90
    %v103 = vtanh.pop %v93
    %v104 = vtanh.pop %v95
    %v105 = vpack.c.bf16 %v97, %v97
    %v106 = vpack.c.bf16 %v98, %v98
    %v107 = vpack.c.bf16 %v99, %v99
    %v108 = vpack.c.bf16 %v100, %v100
    %v109 = vpack.c.bf16 %v101, %v101
    %v110 = vpack.c.bf16 %v102, %v102
    %v111 = vpack.c.bf16 %v103, %v103
    %v112 = vpack.c.bf16 %v104, %v104
    %113 = vst [vmem:[%s3] sm:$0xf] %v105
    %114 = vst [vmem:[%s3 + $0x4] sm:$0xf] %v106
    %115 = vst [vmem:[%s3 + $0x8] sm:$0xf] %v107
    %116 = vst [vmem:[%s3 + $0xc] sm:$0xf] %v108
    %117 = vst [vmem:[%s3 + $0x10] sm:$0xf] %v109
    %118 = vst [vmem:[%s3 + $0x14] sm:$0xf] %v110
    %119 = vst [vmem:[%s3 + $0x18] sm:$0xf] %v111
    %120 = vst [vmem:[%s3 + $0x1c] sm:$0xf] %v112
    // Predicated region
    $region18: #{my_recurrent_network_forward_seq.3} parent=1 // pred_check
      _
    $region19: #{my_recurrent_network_forward_seq.3} parent=1 // pred_check_branch
      %122 = sbr.rel (0) target = $region21
    $region20: #{my_recurrent_network_forward_seq.3} parent=1 // pred_region
      _
    $region21: #{my_recurrent_network_forward_seq.3} parent=1 // pred_fallthru
      _
    // Predicated region
    $region22: #{my_recurrent_network_forward_seq.3} parent=1 // pred_check
      _
    $region23: #{my_recurrent_network_forward_seq.3} parent=1 // pred_check_branch
      %124 = sbr.rel (0) target = $region25
    $region24: #{my_recurrent_network_forward_seq.3} parent=1 // pred_region
      _
    $region25: #{my_recurrent_network_forward_seq.3} parent=1 // pred_fallthru
      _
    %125 = vsyncpa [#allocation3], 1

// kernel: my_recurrent_network_forward_seq.4
$region0: #{my_recurrent_network_forward_seq.4}
  #allocation0 [shape = 'u32[]', space=smem, size = 0x4, offset = 0x4, fixed_abs, tag = 'smem constant byte address 0x4 - core index']
  #allocation1 [shape = 'u32[72,128]{1,0:T(1,128)}', space=vmem, size = 0x9000, scoped, tag = 'internal scratch']
  #allocation2 [shape = 'f32[8,128]{1,0:T(8,128)}', space=vmem, size = 0x1000, scoped, tag = 'scratch operand']
  %s0 = inlined_call_operand.vmem [shape: bf16[8,8,128], index: 0, kind: input, shape index: {}]
  %s1 = inlined_call_operand.hbm [shape: bf16[128,384], index: 1, kind: input, shape index: {}]
  %s2 = inlined_call_operand.hbm [shape: f32[128,384], index: 2, kind: input, shape index: {}]
  %s3 = inlined_call_operand.vmem [shape: f32[1,128], index: 3, kind: input, shape index: {}]
  %s4 = inlined_call_operand.vmem [shape: f32[8,128], index: 4, kind: input, shape index: {}]
  %s5 = inlined_call_operand.vmem [shape: f32[8,8,128], index: 5, kind: output, shape index: {}]
  %s6 = sld [smem:[#allocation0]]
  $region65: #{my_recurrent_network_forward_seq.4} parent=0
    _
  %s8 = ssub.s32 1, %s6
  %s9 = scalar_select 0, %s8, %s6
  $region1: #{my_recurrent_network_forward_seq.4} parent=0
    #allocation3 [shape = 'u8[98304]{0}', space=vmem, size = 0x18000, scoped, tag = 'input window, operand 1, single buffered']
    #allocation4 [shape = 's32[2]{0}', space=sflag, size = 0x8, scoped, tag = 'scoped memory for my_recurrent_network_forward_seq.4']
    #allocation5 [shape = 'u8[196608]{0}', space=vmem, size = 0x30000, scoped, tag = 'input window, operand 2, single buffered']
    #allocation6 [shape = 's32[1]{0}', space=sflag, size = 0x4, scoped, tag = 'scoped memory for my_recurrent_network_forward_seq.4']
    %10 = vsyncpa [#allocation4], 0
    %11 = vsyncpa [#allocation6], 0
    loop: start=0, step=1, limit=10
    $region2: #{my_recurrent_network_forward_seq.4} parent=1 // loop_pre_header
      _
    $region3: #{my_recurrent_network_forward_seq.4} parent=1 // loop_header
      %s13 = sphi 0, %s17
      %p14 = scmp.ge.s32.totalorder %s13, 10
      %s23 = sphi 0, %s25
      %s26 = sphi 0, %s23
      %s27 = sphi 0, %s26
      %s43 = sphi 0, %s27
      %s47 = sphi 0, %s47
      %s49 = sphi 0, %s47
      %s50 = sphi 0, %s49
      %s64 = sphi 0, %s50
      %s68 = sphi 0, %s68
      %s70 = sphi 0, %s68
      %s71 = sphi 0, %s70
      %s85 = sphi 0, %s71
      %s89 = sphi 0, %s89
      %s91 = sphi 0, %s89
      %s92 = sphi 0, %s91
      %s106 = sphi 0, %s92
      %s110 = sphi 0, %s110
      %s112 = sphi 0, %s110
      %s113 = sphi 0, %s112
      %s127 = sphi 0, %s113
      %s133 = sphi 0, %s135
      %s136 = sphi 0, %s133
      %s137 = sphi 0, %s136
      %s153 = sphi 0, %s137
    $region4: #{my_recurrent_network_forward_seq.4} parent=1 // loop_header_branch
      %16 = sbr.rel (%p14) target = $region8
    $region5: #{my_recurrent_network_forward_seq.4} parent=1 // loop_body
      %s18 = ssub.s32 %s13, 1
      %s19 = ssub.s32 %s13, 2
      %s20 = sadd.s32 %s13, 1
      %s21 = ssub.s32 %s13, %s20
      %p22 = scmp.eq.s32.totalorder %s21, 0
      %s24 = sadd.s32 %s23, 1
      %s25 = scalar_select %p22, %s23, %s24
      %p28 = pneg %p22
      %p29 = scmp.eq.s32.totalorder %s13, 7
      %p30 = por %p28, %p29
      %p31 = scmp.ne.s32.totalorder %s23, %s26
      %p32 = scmp.eq.s32.totalorder %s13, 0
      %p33 = por %p31, %p32
      %p34 = scmp.ne.s32.totalorder %s23, %s26
      %p35 = scmp.eq.s32.totalorder %s18, 7
      %p36 = por %p34, %p35
      %p37 = scmp.ne.s32.totalorder %s26, %s27
      %p38 = scmp.eq.s32.totalorder %s18, 0
      %p39 = por %p37, %p38
      %p40 = scmp.ne.s32.totalorder %s26, %s27
      %p41 = scmp.eq.s32.totalorder %s19, 7
      %p42 = por %p40, %p41
      %p44 = scmp.ne.s32.totalorder %s27, %s43
      %p45 = scmp.eq.s32.totalorder %s19, 0
      %p46 = por %p44, %p45
      %s48 = sadd.s32 %s47, 1
      %p51 = scmp.eq.s32.totalorder %s13, 7
      %p52 = scmp.ne.s32.totalorder %s47, %s49
      %p53 = scmp.eq.s32.totalorder %s13, 0
      %p54 = por %p52, %p53
      %p55 = scmp.ne.s32.totalorder %s47, %s49
      %p56 = scmp.eq.s32.totalorder %s18, 7
      %p57 = por %p55, %p56
      %p58 = scmp.ne.s32.totalorder %s49, %s50
      %p59 = scmp.eq.s32.totalorder %s18, 0
      %p60 = por %p58, %p59
      %p61 = scmp.ne.s32.totalorder %s49, %s50
      %p62 = scmp.eq.s32.totalorder %s19, 7
      %p63 = por %p61, %p62
      %p65 = scmp.ne.s32.totalorder %s50, %s64
      %p66 = scmp.eq.s32.totalorder %s19, 0
      %p67 = por %p65, %p66
      %s69 = sadd.s32 %s68, 1
      %p72 = scmp.eq.s32.totalorder %s13, 7
      %p73 = scmp.ne.s32.totalorder %s68, %s70
      %p74 = scmp.eq.s32.totalorder %s13, 0
      %p75 = por %p73, %p74
      %p76 = scmp.ne.s32.totalorder %s68, %s70
      %p77 = scmp.eq.s32.totalorder %s18, 7
      %p78 = por %p76, %p77
      %p79 = scmp.ne.s32.totalorder %s70, %s71
      %p80 = scmp.eq.s32.totalorder %s18, 0
      %p81 = por %p79, %p80
      %p82 = scmp.ne.s32.totalorder %s70, %s71
      %p83 = scmp.eq.s32.totalorder %s19, 7
      %p84 = por %p82, %p83
      %p86 = scmp.ne.s32.totalorder %s71, %s85
      %p87 = scmp.eq.s32.totalorder %s19, 0
      %p88 = por %p86, %p87
      %s90 = sadd.s32 %s89, 1
      %p93 = scmp.eq.s32.totalorder %s13, 7
      %p94 = scmp.ne.s32.totalorder %s89, %s91
      %p95 = scmp.eq.s32.totalorder %s13, 0
      %p96 = por %p94, %p95
      %p97 = scmp.ne.s32.totalorder %s89, %s91
      %p98 = scmp.eq.s32.totalorder %s18, 7
      %p99 = por %p97, %p98
      %p100 = scmp.ne.s32.totalorder %s91, %s92
      %p101 = scmp.eq.s32.totalorder %s18, 0
      %p102 = por %p100, %p101
      %p103 = scmp.ne.s32.totalorder %s91, %s92
      %p104 = scmp.eq.s32.totalorder %s19, 7
      %p105 = por %p103, %p104
      %p107 = scmp.ne.s32.totalorder %s92, %s106
      %p108 = scmp.eq.s32.totalorder %s19, 0
      %p109 = por %p107, %p108
      %s111 = sadd.s32 %s110, 1
      %p114 = scmp.eq.s32.totalorder %s13, 7
      %p115 = scmp.ne.s32.totalorder %s110, %s112
      %p116 = scmp.eq.s32.totalorder %s13, 0
      %p117 = por %p115, %p116
      %p118 = scmp.ne.s32.totalorder %s110, %s112
      %p119 = scmp.eq.s32.totalorder %s18, 7
      %p120 = por %p118, %p119
      %p121 = scmp.ne.s32.totalorder %s112, %s113
      %p122 = scmp.eq.s32.totalorder %s18, 0
      %p123 = por %p121, %p122
      %p124 = scmp.ne.s32.totalorder %s112, %s113
      %p125 = scmp.eq.s32.totalorder %s19, 7
      %p126 = por %p124, %p125
      %p128 = scmp.ne.s32.totalorder %s113, %s127
      %p129 = scmp.eq.s32.totalorder %s19, 0
      %p130 = por %p128, %p129
      %s131 = ssub.s32 %s13, %s20
      %p132 = scmp.eq.s32.totalorder %s131, 0
      %s134 = sadd.s32 %s133, 1
      %s135 = scalar_select %p132, %s133, %s134
      %p138 = pneg %p132
      %p139 = scmp.eq.s32.totalorder %s13, 7
      %p140 = por %p138, %p139
      %p141 = scmp.ne.s32.totalorder %s133, %s136
      %p142 = scmp.eq.s32.totalorder %s13, 0
      %p143 = por %p141, %p142
      %p144 = scmp.ne.s32.totalorder %s133, %s136
      %p145 = scmp.eq.s32.totalorder %s18, 7
      %p146 = por %p144, %p145
      %p147 = scmp.ne.s32.totalorder %s136, %s137
      %p148 = scmp.eq.s32.totalorder %s18, 0
      %p149 = por %p147, %p148
      %p150 = scmp.ne.s32.totalorder %s136, %s137
      %p151 = scmp.eq.s32.totalorder %s19, 7
      %p152 = por %p150, %p151
      %p154 = scmp.ne.s32.totalorder %s137, %s153
      %p155 = scmp.eq.s32.totalorder %s19, 0
      %p156 = por %p154, %p155
      %p157 = scmp.le.s32.totalorder 1, %s13
      %p158 = scmp.lt.s32.totalorder %s13, 9
      %p159 = pnand %p157, %p158
      %p160 = pneg %p159
      // Predicated region
      $region9: #{my_recurrent_network_forward_seq.4} parent=5 // pred_check
        _
      $region10: #{my_recurrent_network_forward_seq.4} parent=5 // pred_check_branch
        %162 = sbr.rel (%p159) target = $region12
      $region11: #{my_recurrent_network_forward_seq.4} parent=5 // pred_region
        %s163 = ssub.s32 %s13, 1
        // Predicated region
        $region13: #{my_recurrent_network_forward_seq.4} parent=11 // pred_check
          %p164 = pneg %p60
        $region14: #{my_recurrent_network_forward_seq.4} parent=11 // pred_check_branch
          %166 = sbr.rel (%p164) target = $region16
        $region15: #{my_recurrent_network_forward_seq.4} parent=11 // pred_region
          %168 = vsyncadd [#allocation4], 0
          %s169 = sshll.u32 %s1, 4
          %s170 = int_to_ptr.hbm [resolvable:$true] %s169
          %s171 = sshll.u32 [#allocation3], 4
          %s172 = int_to_ptr.vmem [resolvable:$true] %s171
          %177 = dma.hbm_to_vmem [thread:$0]  %s170, 3072, %s172, [#allocation4], 192, 192, 12
        $region16: #{my_recurrent_network_forward_seq.4} parent=11 // pred_fallthru
          _
        // Predicated region
        $region17: #{my_recurrent_network_forward_seq.4} parent=11 // pred_check
          %p178 = pneg %p81
        $region18: #{my_recurrent_network_forward_seq.4} parent=11 // pred_check_branch
          %180 = sbr.rel (%p178) target = $region20
        $region19: #{my_recurrent_network_forward_seq.4} parent=11 // pred_region
          %182 = vsyncadd [#allocation6], 0
          %s183 = sshll.u32 %s2, 4
          %s184 = int_to_ptr.hbm [resolvable:$true] %s183
          %s185 = sshll.u32 [#allocation5], 4
          %s186 = int_to_ptr.vmem [resolvable:$true] %s185
          %191 = dma.hbm_to_vmem [thread:$0]  %s184, 6144, %s186, [#allocation6], 384, 384, 24
        $region20: #{my_recurrent_network_forward_seq.4} parent=11 // pred_fallthru
          _
        // Predicated region
        $region21: #{my_recurrent_network_forward_seq.4} parent=11 // pred_check
          %p192 = pneg %p102
        $region22: #{my_recurrent_network_forward_seq.4} parent=11 // pred_check_branch
          %194 = sbr.rel (%p192) target = $region24
        $region23: #{my_recurrent_network_forward_seq.4} parent=11 // pred_region
          _
        $region24: #{my_recurrent_network_forward_seq.4} parent=11 // pred_fallthru
          _
        // Predicated region
        $region25: #{my_recurrent_network_forward_seq.4} parent=11 // pred_check
          %p195 = pneg %p123
        $region26: #{my_recurrent_network_forward_seq.4} parent=11 // pred_check_branch
          %197 = sbr.rel (%p195) target = $region28
        $region27: #{my_recurrent_network_forward_seq.4} parent=11 // pred_region
          _
        $region28: #{my_recurrent_network_forward_seq.4} parent=11 // pred_fallthru
          _
      $region12: #{my_recurrent_network_forward_seq.4} parent=5 // pred_fallthru
        _
      %p198 = scmp.lt.s32.totalorder %s13, 8
      // Predicated region
      $region29: #{my_recurrent_network_forward_seq.4} parent=5 // pred_check
        %p199 = pneg %p198
      $region30: #{my_recurrent_network_forward_seq.4} parent=5 // pred_check_branch
        %201 = sbr.rel (%p199) target = $region32
      $region31: #{my_recurrent_network_forward_seq.4} parent=5 // pred_region
        // Predicated region
        $region33: #{my_recurrent_network_forward_seq.4} parent=31 // pred_check
          %p202 = pneg %p33
        $region34: #{my_recurrent_network_forward_seq.4} parent=31 // pred_check_branch
          %204 = sbr.rel (%p202) target = $region36
        $region35: #{my_recurrent_network_forward_seq.4} parent=31 // pred_region
          %p205 = scmp.lt.s32.totalorder %s13, 7
          %s206 = scalar_select %p205, %s13, 7
          %s207 = smul.addr %s206, 4
          %s208 = scalar_lea.vmem %s0, %s207
        $region36: #{my_recurrent_network_forward_seq.4} parent=31 // pred_fallthru
          _
      $region32: #{my_recurrent_network_forward_seq.4} parent=5 // pred_fallthru
        _
      %p209 = scmp.le.s32.totalorder 1, %s13
      %p210 = scmp.lt.s32.totalorder %s13, 9
      %p211 = pnand %p209, %p210
      %p212 = pneg %p211
      // Predicated region
      $region37: #{my_recurrent_network_forward_seq.4} parent=5 // pred_check
        _
      $region38: #{my_recurrent_network_forward_seq.4} parent=5 // pred_check_branch
        %214 = sbr.rel (%p211) target = $region40
      $region39: #{my_recurrent_network_forward_seq.4} parent=5 // pred_region
        %s215 = ssub.s32 %s13, 1
        // Predicated region
        $region41: #{my_recurrent_network_forward_seq.4} parent=39 // pred_check
          %p216 = pneg %p60
        $region42: #{my_recurrent_network_forward_seq.4} parent=39 // pred_check_branch
          %218 = sbr.rel (%p216) target = $region44
        $region43: #{my_recurrent_network_forward_seq.4} parent=39 // pred_region
          %220 = dma.done [#allocation4], 3072
        $region44: #{my_recurrent_network_forward_seq.4} parent=39 // pred_fallthru
          _
        // Predicated region
        $region45: #{my_recurrent_network_forward_seq.4} parent=39 // pred_check
          %p221 = pneg %p81
        $region46: #{my_recurrent_network_forward_seq.4} parent=39 // pred_check_branch
          %223 = sbr.rel (%p221) target = $region48
        $region47: #{my_recurrent_network_forward_seq.4} parent=39 // pred_region
          %225 = dma.done [#allocation6], 6144
        $region48: #{my_recurrent_network_forward_seq.4} parent=39 // pred_fallthru
          _
        %p226 = scmp.lt.s32.totalorder %s18, 7
        %s227 = scalar_select %p226, %s18, 7
        %s228 = smul.addr %s227, 4
        %s229 = scalar_lea.vmem %s0, %s228
        %p230 = pneg %p39
        %p231 = pneg %p36
        %p232 = pneg %p60
        %p233 = pneg %p57
        %p234 = pneg %p81
        %p235 = pneg %p78
        %p236 = pneg %p102
        %p237 = pneg %p99
        %p238 = pneg %p123
        %p239 = pneg %p120
        %p240 = pneg %p149
        %p241 = pneg %p146
        %p242 = scmp.lt.s32.totalorder %s18, 7
        %s243 = scalar_select %p242, %s18, 7
        %s244 = smul.addr %s243, 8
        %s245 = scalar_lea.vmem %s5, %s244
        %p246 = scmp.lt.s32.totalorder %s18, 7
        %s247 = scalar_select %p246, %s18, 7
        %s248 = smul.addr %s247, 4
        %s249 = scalar_lea.vmem %s0, %s248
        %p250 = scmp.lt.s32.totalorder %s18, 7
        %s251 = scalar_select %p250, %s18, 7
        %s252 = smul.addr %s251, 8
        %s253 = scalar_lea.vmem %s5, %s252
        %p254 = scmp.eq.s32.totalorder %s18, 0
        // Predicated region
        $region49: #{my_recurrent_network_forward_seq.4} parent=39 // pred_check
          %p255 = pneg %p254
        $region50: #{my_recurrent_network_forward_seq.4} parent=39 // pred_check_branch
          %257 = sbr.rel (%p255) target = $region52
        $region51: #{my_recurrent_network_forward_seq.4} parent=39 // pred_region
          %v258 = vld [vmem:[%s4] sm:$0xff]
          %259 = vst [vmem:[#allocation2] sm:$0xff] %v258
        $region52: #{my_recurrent_network_forward_seq.4} parent=39 // pred_fallthru
          _
        %v260 = vld [vmem:[#allocation2] sm:$0xff]
        %v261 = vld [vmem:[%s249] sm:$0xf]
        %v262 = vld [vmem:[#allocation3] sm:$0xff]
        %v263 = vld [vmem:[#allocation3 + $0x8] sm:$0xf]
        %v264 = vld [vmem:[#allocation3 + $0xc] sm:$0xff]
        %v265 = vld [vmem:[#allocation3 + $0x14] sm:$0xf]
        %v266 = vld [vmem:[#allocation3 + $0x18] sm:$0xff]
        %v267 = vld [vmem:[#allocation3 + $0x20] sm:$0xf]
        %v268 = vld [vmem:[#allocation3 + $0x24] sm:$0xff]
        %v269 = vld [vmem:[#allocation3 + $0x2c] sm:$0xf]
        %v270 = vld [vmem:[#allocation3 + $0x30] sm:$0xff]
        %v271 = vld [vmem:[#allocation3 + $0x38] sm:$0xf]
        %v272 = vld [vmem:[#allocation3 + $0x3c] sm:$0xff]
        %v273 = vld [vmem:[#allocation3 + $0x44] sm:$0xf]
        %v274 = vld [vmem:[#allocation3 + $0x48] sm:$0xff]
        %v275 = vld [vmem:[#allocation3 + $0x50] sm:$0xf]
        %v276 = vld [vmem:[#allocation3 + $0x54] sm:$0xff]
        %v277 = vld [vmem:[#allocation3 + $0x5c] sm:$0xf]
        %v278 = vld [vmem:[#allocation3 + $0x60] sm:$0xff]
        %v279 = vld [vmem:[#allocation3 + $0x68] sm:$0xf]
        %v280 = vld [vmem:[#allocation3 + $0x6c] sm:$0xff]
        %v281 = vld [vmem:[#allocation3 + $0x74] sm:$0xf]
        %v282 = vld [vmem:[#allocation3 + $0x78] sm:$0xff]
        %v283 = vld [vmem:[#allocation3 + $0x80] sm:$0xf]
        %v284 = vld [vmem:[#allocation3 + $0x84] sm:$0xff]
        %v285 = vld [vmem:[#allocation3 + $0x8c] sm:$0xf]
        %v286 = vld [vmem:[#allocation3 + $0x90] sm:$0xff]
        %v287 = vld [vmem:[#allocation3 + $0x98] sm:$0xf]
        %v288 = vld [vmem:[#allocation3 + $0x9c] sm:$0xff]
        %v289 = vld [vmem:[#allocation3 + $0xa4] sm:$0xf]
        %v290 = vld [vmem:[#allocation3 + $0xa8] sm:$0xff]
        %v291 = vld [vmem:[#allocation3 + $0xb0] sm:$0xf]
        %v292 = vld [vmem:[#allocation3 + $0xb4] sm:$0xff]
        %v293 = vld [vmem:[#allocation3 + $0xbc] sm:$0xf]
        %v326 = vunpack.c.l.b16 %v262
        %v327 = vunpack.c.h.b16 %v262
        %v328 = vunpack.c.l.b16 %v263
        %v329 = vunpack.c.l.b16 %v264
        %v330 = vunpack.c.h.b16 %v264
        %v331 = vunpack.c.l.b16 %v265
        %v332 = vunpack.c.l.b16 %v266
        %v333 = vunpack.c.h.b16 %v266
        %v334 = vunpack.c.l.b16 %v267
        %v335 = vunpack.c.l.b16 %v268
        %v336 = vunpack.c.h.b16 %v268
        %v337 = vunpack.c.l.b16 %v269
        %v338 = vunpack.c.l.b16 %v270
        %v339 = vunpack.c.h.b16 %v270
        %v340 = vunpack.c.l.b16 %v271
        %v341 = vunpack.c.l.b16 %v272
        %v342 = vunpack.c.h.b16 %v272
        %v343 = vunpack.c.l.b16 %v273
        %v344 = vunpack.c.l.b16 %v274
        %v345 = vunpack.c.h.b16 %v274
        %v346 = vunpack.c.l.b16 %v275
        %v347 = vunpack.c.l.b16 %v276
        %v348 = vunpack.c.h.b16 %v276
        %v349 = vunpack.c.l.b16 %v277
        %v350 = vunpack.c.l.b16 %v278
        %v351 = vunpack.c.h.b16 %v278
        %v352 = vunpack.c.l.b16 %v279
        %v353 = vunpack.c.l.b16 %v280
        %v354 = vunpack.c.h.b16 %v280
        %v355 = vunpack.c.l.b16 %v281
        %v356 = vunpack.c.l.b16 %v282
        %v357 = vunpack.c.h.b16 %v282
        %v358 = vunpack.c.l.b16 %v283
        %v359 = vunpack.c.l.b16 %v284
        %v360 = vunpack.c.h.b16 %v284
        %v361 = vunpack.c.l.b16 %v285
        %v362 = vunpack.c.l.b16 %v286
        %v363 = vunpack.c.h.b16 %v286
        %v364 = vunpack.c.l.b16 %v287
        %v365 = vunpack.c.l.b16 %v288
        %v366 = vunpack.c.h.b16 %v288
        %v367 = vunpack.c.l.b16 %v289
        %v368 = vunpack.c.l.b16 %v290
        %v369 = vunpack.c.h.b16 %v290
        %v370 = vunpack.c.l.b16 %v291
        %v371 = vunpack.c.l.b16 %v292
        %v372 = vunpack.c.h.b16 %v292
        %v373 = vunpack.c.l.b16 %v293
        %v374 = vpack.c.b16 %v329, %v326
        %v375 = vpack.c.b16 %v330, %v327
        %v376 = vpack.c.b16 %v331, %v328
        %v377 = vpack.c.b16 %v335, %v332
        %v378 = vpack.c.b16 %v336, %v333
        %v379 = vpack.c.b16 %v337, %v334
        %v380 = vpack.c.b16 %v341, %v338
        %v381 = vpack.c.b16 %v342, %v339
        %v382 = vpack.c.b16 %v343, %v340
        %v383 = vpack.c.b16 %v347, %v344
        %v384 = vpack.c.b16 %v348, %v345
        %v385 = vpack.c.b16 %v349, %v346
        %v386 = vpack.c.b16 %v353, %v350
        %v387 = vpack.c.b16 %v354, %v351
        %v388 = vpack.c.b16 %v355, %v352
        %v389 = vpack.c.b16 %v359, %v356
        %v390 = vpack.c.b16 %v360, %v357
        %v391 = vpack.c.b16 %v361, %v358
        %v392 = vpack.c.b16 %v365, %v362
        %v393 = vpack.c.b16 %v366, %v363
        %v394 = vpack.c.b16 %v367, %v364
        %v395 = vpack.c.b16 %v371, %v368
        %v396 = vpack.c.b16 %v372, %v369
        %v397 = vpack.c.b16 %v373, %v370
        %422 = vmatpush.bf16.msra.mxu0 %v395
        %423 = vmatpush.bf16.msra.mxu0 %v392
        %424 = vmatpush.bf16.msra.mxu0 %v389
        %425 = vmatpush.bf16.msra.mxu0 %v386
        %426 = vmatpush.bf16.msra.mxu0 %v383
        %427 = vmatpush.bf16.msra.mxu0 %v380
        %428 = vmatpush.bf16.msra.mxu0 %v377
        %429 = vmatpush.bf16.msra.mxu0 %v374
        %430 = vmatmul.bf16.gmra.mxu0 %v261
        %v431 = vpop.f32.mrf.mxu0
        %v432 = vadd.f32 0.0, %v431
        %v433 = vpop.f32.mrf.mxu0
        %434 = vdwg.mxu0
        %435 = vmatpush.bf16.msra.mxu0 %v396
        %436 = vmatpush.bf16.msra.mxu0 %v393
        %437 = vmatpush.bf16.msra.mxu0 %v390
        %438 = vmatpush.bf16.msra.mxu0 %v387
        %439 = vmatpush.bf16.msra.mxu0 %v384
        %440 = vmatpush.bf16.msra.mxu0 %v381
        %441 = vmatpush.bf16.msra.mxu0 %v378
        %442 = vmatpush.bf16.msra.mxu0 %v375
        %443 = vmatmul.bf16.gmra.mxu0 %v261
        %v444 = vpop.f32.mrf.mxu0
        %v445 = vadd.f32 0.0, %v444
        %v446 = vpop.f32.mrf.mxu0
        %447 = vdwg.mxu0
        %448 = vmatpush.bf16.msra.mxu0 %v397
        %449 = vmatpush.bf16.msra.mxu0 %v394
        %450 = vmatpush.bf16.msra.mxu0 %v391
        %451 = vmatpush.bf16.msra.mxu0 %v388
        %452 = vmatpush.bf16.msra.mxu0 %v385
        %453 = vmatpush.bf16.msra.mxu0 %v382
        %454 = vmatpush.bf16.msra.mxu0 %v379
        %455 = vmatpush.bf16.msra.mxu0 %v376
        %456 = vmatmul.bf16.gmra.mxu0 %v261
        %v457 = vpop.f32.mrf.mxu0
        %v458 = vadd.f32 0.0, %v457
        %v459 = vpop.f32.mrf.mxu0
        %460 = vdwg.mxu0
        %v461 = vld [vmem:[#allocation5] sm:$0xff]
        %v462 = vld [vmem:[#allocation5 + $0x8] sm:$0xff]
        %v463 = vld [vmem:[#allocation5 + $0x10] sm:$0xff]
        %v464 = vld [vmem:[#allocation5 + $0x18] sm:$0xff]
        %v465 = vld [vmem:[#allocation5 + $0x20] sm:$0xff]
        %v466 = vld [vmem:[#allocation5 + $0x28] sm:$0xff]
        %v467 = vld [vmem:[#allocation5 + $0x30] sm:$0xff]
        %v468 = vld [vmem:[#allocation5 + $0x38] sm:$0xff]
        %v469 = vld [vmem:[#allocation5 + $0x40] sm:$0xff]
        %v470 = vld [vmem:[#allocation5 + $0x48] sm:$0xff]
        %v471 = vld [vmem:[#allocation5 + $0x50] sm:$0xff]
        %v472 = vld [vmem:[#allocation5 + $0x58] sm:$0xff]
        %v473 = vld [vmem:[#allocation5 + $0x60] sm:$0xff]
        %v474 = vld [vmem:[#allocation5 + $0x68] sm:$0xff]
        %v475 = vld [vmem:[#allocation5 + $0x70] sm:$0xff]
        %v476 = vld [vmem:[#allocation5 + $0x78] sm:$0xff]
        %v477 = vld [vmem:[#allocation5 + $0x80] sm:$0xff]
        %v478 = vld [vmem:[#allocation5 + $0x88] sm:$0xff]
        %v479 = vld [vmem:[#allocation5 + $0x90] sm:$0xff]
        %v480 = vld [vmem:[#allocation5 + $0x98] sm:$0xff]
        %v481 = vld [vmem:[#allocation5 + $0xa0] sm:$0xff]
        %v482 = vld [vmem:[#allocation5 + $0xa8] sm:$0xff]
        %v483 = vld [vmem:[#allocation5 + $0xb0] sm:$0xff]
        %v484 = vld [vmem:[#allocation5 + $0xb8] sm:$0xff]
        %v485 = vld [vmem:[#allocation5 + $0xc0] sm:$0xff]
        %v486 = vld [vmem:[#allocation5 + $0xc8] sm:$0xff]
        %v487 = vld [vmem:[#allocation5 + $0xd0] sm:$0xff]
        %v488 = vld [vmem:[#allocation5 + $0xd8] sm:$0xff]
        %v489 = vld [vmem:[#allocation5 + $0xe0] sm:$0xff]
        %v490 = vld [vmem:[#allocation5 + $0xe8] sm:$0xff]
        %v491 = vld [vmem:[#allocation5 + $0xf0] sm:$0xff]
        %v492 = vld [vmem:[#allocation5 + $0xf8] sm:$0xff]
        %v493 = vld [vmem:[#allocation5 + $0x100] sm:$0xff]
        %v494 = vld [vmem:[#allocation5 + $0x108] sm:$0xff]
        %v495 = vld [vmem:[#allocation5 + $0x110] sm:$0xff]
        %v496 = vld [vmem:[#allocation5 + $0x118] sm:$0xff]
        %v497 = vld [vmem:[#allocation5 + $0x120] sm:$0xff]
        %v498 = vld [vmem:[#allocation5 + $0x128] sm:$0xff]
        %v499 = vld [vmem:[#allocation5 + $0x130] sm:$0xff]
        %v500 = vld [vmem:[#allocation5 + $0x138] sm:$0xff]
        %v501 = vld [vmem:[#allocation5 + $0x140] sm:$0xff]
        %v502 = vld [vmem:[#allocation5 + $0x148] sm:$0xff]
        %v503 = vld [vmem:[#allocation5 + $0x150] sm:$0xff]
        %v504 = vld [vmem:[#allocation5 + $0x158] sm:$0xff]
        %v505 = vld [vmem:[#allocation5 + $0x160] sm:$0xff]
        %v506 = vld [vmem:[#allocation5 + $0x168] sm:$0xff]
        %v507 = vld [vmem:[#allocation5 + $0x170] sm:$0xff]
        %v508 = vld [vmem:[#allocation5 + $0x178] sm:$0xff]
        %509 = vmatpush.msra.mxu0 %v506
        %510 = vmatpush.msra.mxu0 %v503
        %511 = vmatpush.msra.mxu0 %v500
        %512 = vmatpush.msra.mxu0 %v497
        %513 = vmatpush.msra.mxu0 %v494
        %514 = vmatpush.msra.mxu0 %v491
        %515 = vmatpush.msra.mxu0 %v488
        %516 = vmatpush.msra.mxu0 %v485
        %517 = vmatpush.msra.mxu0 %v482
        %518 = vmatpush.msra.mxu0 %v479
        %519 = vmatpush.msra.mxu0 %v476
        %520 = vmatpush.msra.mxu0 %v473
        %521 = vmatpush.msra.mxu0 %v470
        %522 = vmatpush.msra.mxu0 %v467
        %523 = vmatpush.msra.mxu0 %v464
        %524 = vmatpush.msra.mxu0 %v461
        %525 = vmatmul.f32.gmra.mxu0 %v260
        %v526 = vpop.f32.mrf.mxu0
        %v527 = vadd.f32 0.0, %v526
        %528 = vdwg.mxu0
        %529 = vmatpush.msra.mxu0 %v507
        %530 = vmatpush.msra.mxu0 %v504
        %531 = vmatpush.msra.mxu0 %v501
        %532 = vmatpush.msra.mxu0 %v498
        %533 = vmatpush.msra.mxu0 %v495
        %534 = vmatpush.msra.mxu0 %v492
        %535 = vmatpush.msra.mxu0 %v489
        %536 = vmatpush.msra.mxu0 %v486
        %537 = vmatpush.msra.mxu0 %v483
        %538 = vmatpush.msra.mxu0 %v480
        %539 = vmatpush.msra.mxu0 %v477
        %540 = vmatpush.msra.mxu0 %v474
        %541 = vmatpush.msra.mxu0 %v471
        %542 = vmatpush.msra.mxu0 %v468
        %543 = vmatpush.msra.mxu0 %v465
        %544 = vmatpush.msra.mxu0 %v462
        %545 = vmatmul.f32.gmra.mxu0 %v260
        %v546 = vpop.f32.mrf.mxu0
        %v547 = vadd.f32 0.0, %v546
        %548 = vdwg.mxu0
        %549 = vmatpush.msra.mxu0 %v508
        %550 = vmatpush.msra.mxu0 %v505
        %551 = vmatpush.msra.mxu0 %v502
        %552 = vmatpush.msra.mxu0 %v499
        %553 = vmatpush.msra.mxu0 %v496
        %554 = vmatpush.msra.mxu0 %v493
        %555 = vmatpush.msra.mxu0 %v490
        %556 = vmatpush.msra.mxu0 %v487
        %557 = vmatpush.msra.mxu0 %v484
        %558 = vmatpush.msra.mxu0 %v481
        %559 = vmatpush.msra.mxu0 %v478
        %560 = vmatpush.msra.mxu0 %v475
        %561 = vmatpush.msra.mxu0 %v472
        %562 = vmatpush.msra.mxu0 %v469
        %563 = vmatpush.msra.mxu0 %v466
        %564 = vmatpush.msra.mxu0 %v463
        %565 = vmatmul.f32.gmra.mxu0 %v260
        %v566 = vpop.f32.mrf.mxu0
        %v567 = vadd.f32 0.0, %v566
        %568 = vdwg.mxu0
        %v569 = vadd.f32 %v432, %v527
        %v570 = vxor.u32 %v569, 2147483648
        %v571 = vmul.f32 %v570, 1.442695
        %v572 = vpow.pop %v571
        %v573 = vadd.f32 %v572, 1.0
        %v574 = vrcp.pop %v573
        %v575 = vmul.f32 %v573, %v574
        %v576 = vsub.f32 1.0, %v575
        %v577 = vmul.f32 %v574, %v576
        %v578 = vadd.f32 %v574, %v577
        %vm579 = vweird.f32 %v573
        %vm580 = vweird.f32 %v574
        %vm581 = vmor %vm579, %vm580
        %v582 = vsel %vm581, %v574, %v578
        %v583 = vand.u32 2147483647, %v573
        %vm584 = vcmp.eq.f32.partialorder %v583, 8.507059e+37
        %v585 = vand.u32 %v573, 2147483648
        %v586 = vor.u32 1.1754944e-38, %v585
        %v587 = vsel %vm584, %v586, %v582
        %v588 = vmul.f32 1.0, %v587
        %v589 = vadd.f32 %v445, %v547
        %v590 = vxor.u32 %v589, 2147483648
        %v591 = vmul.f32 %v590, 1.442695
        %v592 = vpow.pop %v591
        %v593 = vadd.f32 %v592, 1.0
        %v594 = vrcp.pop %v593
        %v595 = vmul.f32 %v593, %v594
        %v596 = vsub.f32 1.0, %v595
        %v597 = vmul.f32 %v594, %v596
        %v598 = vadd.f32 %v594, %v597
        %vm599 = vweird.f32 %v593
        %vm600 = vweird.f32 %v594
        %vm601 = vmor %vm599, %vm600
        %v602 = vsel %vm601, %v594, %v598
        %v603 = vand.u32 2147483647, %v593
        %vm604 = vcmp.eq.f32.partialorder %v603, 8.507059e+37
        %v605 = vand.u32 %v593, 2147483648
        %v606 = vor.u32 1.1754944e-38, %v605
        %v607 = vsel %vm604, %v606, %v602
        %v608 = vmul.f32 1.0, %v607
        %v609 = vld [vmem:[%s3] sm:$0x1]
        %v611 = vperm.slane %v609, 0
        %v613 = vadd.f32 %v567, %v611
        %v614 = vmul.f32 %v588, %v613
        %v615 = vadd.f32 %v458, %v614
        %v616 = vtanh.pop %v615
        %v617 = vsub.f32 1.0, %v608
        %v618 = vmul.f32 %v617, %v616
        %v619 = vmul.f32 %v608, %v260
        %v620 = vadd.f32 %v618, %v619
        %621 = vst [vmem:[#allocation2] sm:$0xff] %v620
        %622 = vst [vmem:[%s253] sm:$0xff] %v620
        %p623 = scmp.lt.s32.totalorder %s18, 7
        %s624 = scalar_select %p623, %s18, 7
        %s625 = smul.addr %s624, 8
        %s626 = scalar_lea.vmem %s5, %s625
        // Predicated region
        $region53: #{my_recurrent_network_forward_seq.4} parent=39 // pred_check
          %p627 = pneg %p146
        $region54: #{my_recurrent_network_forward_seq.4} parent=39 // pred_check_branch
          %629 = sbr.rel (%p627) target = $region56
        $region55: #{my_recurrent_network_forward_seq.4} parent=39 // pred_region
          _
        $region56: #{my_recurrent_network_forward_seq.4} parent=39 // pred_fallthru
          _
      $region40: #{my_recurrent_network_forward_seq.4} parent=5 // pred_fallthru
        _
      %p630 = scmp.le.s32.totalorder 2, %s13
      // Predicated region
      $region57: #{my_recurrent_network_forward_seq.4} parent=5 // pred_check
        %p631 = pneg %p630
      $region58: #{my_recurrent_network_forward_seq.4} parent=5 // pred_check_branch
        %633 = sbr.rel (%p631) target = $region60
      $region59: #{my_recurrent_network_forward_seq.4} parent=5 // pred_region
        %s634 = ssub.s32 %s13, 2
        // Predicated region
        $region61: #{my_recurrent_network_forward_seq.4} parent=59 // pred_check
          %p635 = pneg %p152
        $region62: #{my_recurrent_network_forward_seq.4} parent=59 // pred_check_branch
          %637 = sbr.rel (%p635) target = $region64
        $region63: #{my_recurrent_network_forward_seq.4} parent=59 // pred_region
          %p638 = scmp.lt.s32.totalorder %s19, 7
          %s639 = scalar_select %p638, %s19, 7
          %s640 = smul.addr %s639, 8
          %s641 = scalar_lea.vmem %s5, %s640
        $region64: #{my_recurrent_network_forward_seq.4} parent=59 // pred_fallthru
          _
      $region60: #{my_recurrent_network_forward_seq.4} parent=5 // pred_fallthru
        _
    $region6: #{my_recurrent_network_forward_seq.4} parent=1 // loop_footer
      %s17 = sadd.s32 1, %s13
    $region7: #{my_recurrent_network_forward_seq.4} parent=1 // loop_footer_branch
      %12 = sbr.rel target = $region3
    $region8: #{my_recurrent_network_forward_seq.4} parent=1 // loop_exit
      _
    %642 = vsyncpa [#allocation4], 1
    %s643 = scalar_lea.sflag [#allocation4], 1
    %644 = vsyncpa %s643, 1
    %645 = vsyncpa [#allocation6], 1

</llo_original>
